<compile_context>
chip_gen: v6e
topology: v6e:2x2x1
jax: 0.10.0
libtpu: 0.0.40
codegen_flags: <defaults>
</compile_context>

<pallas_src>
import jax
import jax.numpy as jnp
from jax.experimental import pallas as pl
from jax.experimental.pallas import tpu as pltpu

EPS = 1e-5  # torch.nn.LayerNorm default eps


# ----------------------------------------------------------------------------
# Fused kernel: LayerNorm + Linear1 + ReLU + Linear2 on a (tm, c_z) row tile.
# ----------------------------------------------------------------------------
def pair_transition_kernel(z_ref, gamma_ref, beta_ref, w1_ref, b1_ref,
                           w2_ref, b2_ref, o_ref):
    z = z_ref[...].astype(jnp.float32)                     # (tm, c_z)
    c = z.shape[-1]
    inv_c = 1.0 / c

    # One-pass LayerNorm stats in f32 (biased variance, eps inside rsqrt,
    # matching torch.nn.LayerNorm).
    s1 = jnp.sum(z, axis=-1, keepdims=True)
    s2 = jnp.sum(z * z, axis=-1, keepdims=True)
    mu = s1 * inv_c
    var = s2 * inv_c - mu * mu
    zn = (z - mu) * jax.lax.rsqrt(var + EPS)
    zn = zn * gamma_ref[...] + beta_ref[...]

    # bf16 MXU operands, f32 accumulation.
    a = jnp.dot(zn.astype(jnp.bfloat16), w1_ref[...],
                preferred_element_type=jnp.float32) + b1_ref[...]
    a = jnp.maximum(a, 0.0)                                # ReLU (VPU)
    out = jnp.dot(a.astype(jnp.bfloat16), w2_ref[...],
                  preferred_element_type=jnp.float32) + b2_ref[...]
    o_ref[...] = out.astype(o_ref.dtype)


def _row_tile(m, cap=2048):
    """Fixed row tile: multiple of 8, <= cap, and >= 2 grid steps when m >= 16.

    Rows are independent, so the cdiv grid's ragged last block is safe."""
    if m <= 8:
        return m                       # single block equal to the full array
    half = -(-m // 2)                  # ceil(m / 2)  -> guarantees >= 2 steps
    return min(cap, -(-half // 8) * 8)


# ----------------------------------------------------------------------------
# Wrapper
# ----------------------------------------------------------------------------
def pair_transition(z, params, *, row_tile_cap=2048):
    *lead, c_z = z.shape
    c_inter = params["w1"].shape[1]
    m = 1
    for d in lead:
        m *= d
    z_flat = z.reshape(m, c_z)
    tm = _row_tile(m, row_tile_cap)
    grid = (pl.cdiv(m, tm),)

    out_flat = pl.pallas_call(
        pair_transition_kernel,
        out_shape=jax.ShapeDtypeStruct((m, c_z), z.dtype),
        grid=grid,
        in_specs=[
            pl.BlockSpec((tm, c_z), lambda i: (i, 0)),          # z rows
            pl.BlockSpec((1, c_z), lambda i: (0, 0)),           # ln gamma
            pl.BlockSpec((1, c_z), lambda i: (0, 0)),           # ln beta
            pl.BlockSpec((c_z, c_inter), lambda i: (0, 0)),     # W1 (bf16)
            pl.BlockSpec((1, c_inter), lambda i: (0, 0)),       # b1
            pl.BlockSpec((c_inter, c_z), lambda i: (0, 0)),     # W2 (bf16)
            pl.BlockSpec((1, c_z), lambda i: (0, 0)),           # b2
        ],
        out_specs=pl.BlockSpec((tm, c_z), lambda i: (i, 0)),
        compiler_params=pltpu.CompilerParams(
            dimension_semantics=("parallel",),
            vmem_limit_bytes=48 * 1024 * 1024),
    )(z_flat,
      params["ln_gamma"].reshape(1, c_z).astype(jnp.float32),
      params["ln_beta"].reshape(1, c_z).astype(jnp.float32),
      params["w1"].astype(jnp.bfloat16),
      params["b1"].reshape(1, c_inter).astype(jnp.float32),
      params["w2"].astype(jnp.bfloat16),
      params["b2"].reshape(1, c_z).astype(jnp.float32))
    return out_flat.reshape(z.shape)


# ----------------------------------------------------------------------------
# Pure-JAX f32 reference mirroring the PyTorch module (for verification).
# ----------------------------------------------------------------------------
def pair_transition_ref(z, params):
    mu = jnp.mean(z, axis=-1, keepdims=True)
    var = jnp.mean((z - mu) ** 2, axis=-1, keepdims=True)
    zn = (z - mu) / jnp.sqrt(var + EPS) * params["ln_gamma"] + params["ln_beta"]
    a = jnp.maximum(zn @ params["w1"] + params["b1"], 0.0)
    return a @ params["w2"] + params["b2"]


if __name__ == "__main__":
    N_RES = 8
    C_Z = 128          # pair-representation width (keeps all lanes dense)
    N_FACTOR = 4
    C_INTER = C_Z * N_FACTOR

    key = jax.random.PRNGKey(0)
    ks = jax.random.split(key, 7)
    params = {
        "ln_gamma": 1.0 + 0.1 * jax.random.normal(ks[0], (C_Z,), jnp.float32),
        "ln_beta": 0.1 * jax.random.normal(ks[1], (C_Z,), jnp.float32),
        "w1": 0.1 * jax.random.normal(ks[2], (C_Z, C_INTER), jnp.float32),
        "b1": 0.1 * jax.random.normal(ks[3], (C_INTER,), jnp.float32),
        "w2": 0.1 * jax.random.normal(ks[4], (C_INTER, C_Z), jnp.float32),
        "b2": 0.1 * jax.random.normal(ks[5], (C_Z,), jnp.float32),
    }
    z = jax.random.normal(ks[6], (N_RES, N_RES, C_Z), jnp.float32)

    out = jax.block_until_ready(pair_transition(z, params))
    ref = pair_transition_ref(z, params)
    # bf16 matmul operands (f32 accumulation) => looser tolerance vs f32 ref.
    if not jnp.allclose(out, ref, rtol=5e-2, atol=5e-2):
        raise AssertionError(
            f"mismatch: max err {float(jnp.max(jnp.abs(out - ref)))}")
    print("KERNEL_OK")
</pallas_src>

<mosaic_0001>
module attributes {stable_mosaic.version = 11 : i64} {
  func.func @pair_transition_kernel(%arg0: i32, %arg1: memref<32x128xf32, #tpu.memory_space<vmem>>, %arg2: memref<1x128xf32, #tpu.memory_space<vmem>>, %arg3: memref<1x128xf32, #tpu.memory_space<vmem>>, %arg4: memref<128x512xbf16, #tpu.memory_space<vmem>>, %arg5: memref<1x512xf32, #tpu.memory_space<vmem>>, %arg6: memref<512x128xbf16, #tpu.memory_space<vmem>>, %arg7: memref<1x128xf32, #tpu.memory_space<vmem>>, %arg8: memref<32x128xf32, #tpu.memory_space<vmem>>) attributes {dimension_semantics = [#tpu.dimension_semantics<parallel>], iteration_bounds = array<i64: 2>, scalar_prefetch = 0 : i64, scratch_operands = 0 : i64, tpu.core_type = #tpu.core_type<tc>, window_params = [{transform_indices = @transform_0, window_bounds = array<i64: 32, 128>}, {pipeline_mode = #tpu.pipeline_mode<synchronous>, transform_indices = @transform_1, window_bounds = array<i64: 1, 128>}, {pipeline_mode = #tpu.pipeline_mode<synchronous>, transform_indices = @transform_2, window_bounds = array<i64: 1, 128>}, {pipeline_mode = #tpu.pipeline_mode<synchronous>, transform_indices = @transform_3, window_bounds = array<i64: 128, 512>}, {pipeline_mode = #tpu.pipeline_mode<synchronous>, transform_indices = @transform_4, window_bounds = array<i64: 1, 512>}, {pipeline_mode = #tpu.pipeline_mode<synchronous>, transform_indices = @transform_5, window_bounds = array<i64: 512, 128>}, {pipeline_mode = #tpu.pipeline_mode<synchronous>, transform_indices = @transform_6, window_bounds = array<i64: 1, 128>}, {transform_indices = @transform_7, window_bounds = array<i64: 32, 128>}]} {
    %c0 = arith.constant 0 : index
    %c0_0 = arith.constant 0 : index
    %0 = vector.load %arg1[%c0, %c0_0] : memref<32x128xf32, #tpu.memory_space<vmem>>, vector<32x128xf32>
    %cst = arith.constant dense<0.000000e+00> : vector<32xf32>
    %1 = vector.multi_reduction <add>, %0, %cst [1] : vector<32x128xf32> to vector<32xf32>
    %2 = vector.shape_cast %1 : vector<32xf32> to vector<32x1xf32>
    %3 = arith.mulf %0, %0 : vector<32x128xf32>
    %cst_1 = arith.constant dense<0.000000e+00> : vector<32xf32>
    %4 = vector.multi_reduction <add>, %3, %cst_1 [1] : vector<32x128xf32> to vector<32xf32>
    %5 = vector.shape_cast %4 : vector<32xf32> to vector<32x1xf32>
    %cst_2 = arith.constant 7.812500e-03 : f32
    %6 = vector.broadcast %cst_2 : f32 to vector<32x1xf32>
    %7 = arith.mulf %2, %6 : vector<32x1xf32>
    %cst_3 = arith.constant 7.812500e-03 : f32
    %8 = vector.broadcast %cst_3 : f32 to vector<32x1xf32>
    %9 = arith.mulf %5, %8 : vector<32x1xf32>
    %10 = arith.mulf %7, %7 : vector<32x1xf32>
    %11 = arith.subf %9, %10 : vector<32x1xf32>
    %12 = vector.broadcast %7 : vector<32x1xf32> to vector<32x128xf32>
    %13 = arith.subf %0, %12 : vector<32x128xf32>
    %cst_4 = arith.constant 9.99999974E-6 : f32
    %14 = vector.broadcast %cst_4 : f32 to vector<32x1xf32>
    %15 = arith.addf %11, %14 : vector<32x1xf32>
    %16 = math.rsqrt %15 : vector<32x1xf32>
    %17 = vector.broadcast %16 : vector<32x1xf32> to vector<32x128xf32>
    %18 = arith.mulf %13, %17 : vector<32x128xf32>
    %c0_5 = arith.constant 0 : index
    %c0_6 = arith.constant 0 : index
    %19 = vector.load %arg2[%c0_5, %c0_6] : memref<1x128xf32, #tpu.memory_space<vmem>>, vector<1x128xf32>
    %20 = vector.broadcast %19 : vector<1x128xf32> to vector<32x128xf32>
    %21 = arith.mulf %18, %20 : vector<32x128xf32>
    %c0_7 = arith.constant 0 : index
    %c0_8 = arith.constant 0 : index
    %22 = vector.load %arg3[%c0_7, %c0_8] : memref<1x128xf32, #tpu.memory_space<vmem>>, vector<1x128xf32>
    %23 = vector.broadcast %22 : vector<1x128xf32> to vector<32x128xf32>
    %24 = arith.addf %21, %23 : vector<32x128xf32>
    %25 = arith.truncf %24 : vector<32x128xf32> to vector<32x128xbf16>
    %c0_9 = arith.constant 0 : index
    %c0_10 = arith.constant 0 : index
    %26 = vector.load %arg4[%c0_9, %c0_10] : memref<128x512xbf16, #tpu.memory_space<vmem>>, vector<128x512xbf16>
    %cst_11 = arith.constant dense<0.000000e+00> : vector<32x512xf32>
    %27 = tpu.matmul %25, %26, %cst_11 {dimension_numbers = #tpu.dot_dimension_numbers<[1], [0], [0], [1], [0, 0, 1, 1], [], []>} : vector<32x128xbf16>, vector<128x512xbf16>, vector<32x512xf32> -> vector<32x512xf32>
    %c0_12 = arith.constant 0 : index
    %c0_13 = arith.constant 0 : index
    %28 = vector.load %arg5[%c0_12, %c0_13] : memref<1x512xf32, #tpu.memory_space<vmem>>, vector<1x512xf32>
    %29 = vector.broadcast %28 : vector<1x512xf32> to vector<32x512xf32>
    %30 = arith.addf %27, %29 : vector<32x512xf32>
    %cst_14 = arith.constant 0.000000e+00 : f32
    %31 = vector.broadcast %cst_14 : f32 to vector<32x512xf32>
    %32 = arith.maximumf %30, %31 : vector<32x512xf32>
    %33 = arith.truncf %32 : vector<32x512xf32> to vector<32x512xbf16>
    %c0_15 = arith.constant 0 : index
    %c0_16 = arith.constant 0 : index
    %34 = vector.load %arg6[%c0_15, %c0_16] : memref<512x128xbf16, #tpu.memory_space<vmem>>, vector<512x128xbf16>
    %cst_17 = arith.constant dense<0.000000e+00> : vector<32x128xf32>
    %35 = tpu.matmul %33, %34, %cst_17 {dimension_numbers = #tpu.dot_dimension_numbers<[1], [0], [0], [1], [0, 0, 1, 1], [], []>} : vector<32x512xbf16>, vector<512x128xbf16>, vector<32x128xf32> -> vector<32x128xf32>
    %c0_18 = arith.constant 0 : index
    %c0_19 = arith.constant 0 : index
    %36 = vector.load %arg7[%c0_18, %c0_19] : memref<1x128xf32, #tpu.memory_space<vmem>>, vector<1x128xf32>
    %37 = vector.broadcast %36 : vector<1x128xf32> to vector<32x128xf32>
    %38 = arith.addf %35, %37 : vector<32x128xf32>
    %c0_20 = arith.constant 0 : index
    %c0_21 = arith.constant 0 : index
    %39 = vector.load %arg8[%c0_20, %c0_21] : memref<32x128xf32, #tpu.memory_space<vmem>>, vector<32x128xf32>
    tpu.vector_store %arg8[%c0_20, %c0_21], %38 {strides = array<i32>} : memref<32x128xf32, #tpu.memory_space<vmem>>, vector<32x128xf32>,
    return
  }
  func.func @transform_0(%arg0: i32) -> (i32, i32) {
    %c0_i32 = arith.constant 0 : i32
    %c0_i32_0 = arith.constant 0 : i32
    return %arg0, %c0_i32 : i32, i32
  }
  func.func @transform_1(%arg0: i32) -> (i32, i32) {
    %c0_i32 = arith.constant 0 : i32
    %c0_i32_0 = arith.constant 0 : i32
    %c0_i32_1 = arith.constant 0 : i32
    return %c0_i32, %c0_i32_0 : i32, i32
  }
  func.func @transform_2(%arg0: i32) -> (i32, i32) {
    %c0_i32 = arith.constant 0 : i32
    %c0_i32_0 = arith.constant 0 : i32
    %c0_i32_1 = arith.constant 0 : i32
    return %c0_i32, %c0_i32_0 : i32, i32
  }
  func.func @transform_3(%arg0: i32) -> (i32, i32) {
    %c0_i32 = arith.constant 0 : i32
    %c0_i32_0 = arith.constant 0 : i32
    %c0_i32_1 = arith.constant 0 : i32
    return %c0_i32, %c0_i32_0 : i32, i32
  }
  func.func @transform_4(%arg0: i32) -> (i32, i32) {
    %c0_i32 = arith.constant 0 : i32
    %c0_i32_0 = arith.constant 0 : i32
    %c0_i32_1 = arith.constant 0 : i32
    return %c0_i32, %c0_i32_0 : i32, i32
  }
  func.func @transform_5(%arg0: i32) -> (i32, i32) {
    %c0_i32 = arith.constant 0 : i32
    %c0_i32_0 = arith.constant 0 : i32
    %c0_i32_1 = arith.constant 0 : i32
    return %c0_i32, %c0_i32_0 : i32, i32
  }
  func.func @transform_6(%arg0: i32) -> (i32, i32) {
    %c0_i32 = arith.constant 0 : i32
    %c0_i32_0 = arith.constant 0 : i32
    %c0_i32_1 = arith.constant 0 : i32
    return %c0_i32, %c0_i32_0 : i32, i32
  }
  func.func @transform_7(%arg0: i32) -> (i32, i32) {
    %c0_i32 = arith.constant 0 : i32
    %c0_i32_0 = arith.constant 0 : i32
    return %arg0, %c0_i32 : i32, i32
  }
}

</mosaic_0001>

<llo_original>
// kernel: tpu_custom_call.1
$region0: #{tpu_custom_call.1}
  #allocation0 [shape = 'u32[]', space=smem, size = 0x4, offset = 0x4, fixed_abs, tag = 'smem constant byte address 0x4 - core index']
  #allocation1 [shape = 'u32[144,128]{1,0:T(1,128)}', space=vmem, size = 0x12000, scoped, tag = 'internal scratch']
  %s0 = inlined_call_operand.hbm [shape: f32[64,128], index: 0, kind: input, shape index: {}]
  %s1 = inlined_call_operand.vmem [shape: f32[1,128], index: 1, kind: input, shape index: {}]
  %s2 = inlined_call_operand.vmem [shape: f32[1,128], index: 2, kind: input, shape index: {}]
  %s3 = inlined_call_operand.hbm [shape: bf16[128,512], index: 3, kind: input, shape index: {}]
  %s4 = inlined_call_operand.vmem [shape: f32[1,512], index: 4, kind: input, shape index: {}]
  %s5 = inlined_call_operand.hbm [shape: bf16[512,128], index: 5, kind: input, shape index: {}]
  %s6 = inlined_call_operand.vmem [shape: f32[1,128], index: 6, kind: input, shape index: {}]
  %s7 = inlined_call_operand.hbm [shape: f32[64,128], index: 7, kind: output, shape index: {}]
  %s8 = sld [smem:[#allocation0]]
  $region73: #{tpu_custom_call.1} parent=0
    _
  %s10 = ssub.s32 1, %s8
  %s11 = scalar_select 0, %s10, %s8
  $region1: #{tpu_custom_call.1} parent=0
    #allocation2 [shape = 'u8[32768]{0}', space=vmem, size = 0x8000, scoped, tag = 'input window, operand 0']
    #allocation3 [shape = 's32[2]{0}', space=sflag, size = 0x8, scoped, tag = 'scoped memory for tpu_custom_call.1']
    #allocation4 [shape = 's32[2]{0}', space=sflag, size = 0x8, scoped, tag = 'scoped memory for tpu_custom_call.1']
    #allocation5 [shape = 'u8[131072]{0}', space=vmem, size = 0x20000, scoped, tag = 'input window, operand 3, single buffered']
    #allocation6 [shape = 's32[1]{0}', space=sflag, size = 0x4, scoped, tag = 'scoped memory for tpu_custom_call.1']
    #allocation7 [shape = 'u8[131072]{0}', space=vmem, size = 0x20000, scoped, tag = 'input window, operand 5, single buffered']
    #allocation8 [shape = 'u8[32768]{0}', space=vmem, size = 0x8000, scoped, tag = 'output window, operand 0']
    %12 = vsyncpa [#allocation3], 0
    %s13 = scalar_lea.sflag [#allocation3], 1
    %14 = vsyncpa %s13, 0
    %15 = vsyncpa [#allocation6], 0
    %16 = vsyncpa [#allocation4], 0
    %s17 = scalar_lea.sflag [#allocation4], 1
    %18 = vsyncpa %s17, 0
    loop: start=0, step=1, limit=4
    $region2: #{tpu_custom_call.1} parent=1 // loop_pre_header
      _
    $region3: #{tpu_custom_call.1} parent=1 // loop_header
      %s20 = sphi 0, %s24
      %p21 = scmp.ge.s32.totalorder %s20, 4
      %s30 = sphi 0, %s32
      %s33 = sphi 0, %s30
      %s34 = sphi 0, %s33
      %s50 = sphi 0, %s34
      %s54 = sphi 0, %s54
      %s56 = sphi 0, %s54
      %s57 = sphi 0, %s56
      %s71 = sphi 0, %s57
      %s75 = sphi 0, %s75
      %s77 = sphi 0, %s75
      %s78 = sphi 0, %s77
      %s92 = sphi 0, %s78
      %s96 = sphi 0, %s96
      %s98 = sphi 0, %s96
      %s99 = sphi 0, %s98
      %s113 = sphi 0, %s99
      %s117 = sphi 0, %s117
      %s119 = sphi 0, %s117
      %s120 = sphi 0, %s119
      %s134 = sphi 0, %s120
      %s138 = sphi 0, %s138
      %s140 = sphi 0, %s138
      %s141 = sphi 0, %s140
      %s155 = sphi 0, %s141
      %s159 = sphi 0, %s159
      %s161 = sphi 0, %s159
      %s162 = sphi 0, %s161
      %s176 = sphi 0, %s162
      %s182 = sphi 0, %s184
      %s185 = sphi 0, %s182
      %s186 = sphi 0, %s185
      %s202 = sphi 0, %s186
    $region4: #{tpu_custom_call.1} parent=1 // loop_header_branch
      %23 = sbr.rel (%p21) target = $region8
    $region5: #{tpu_custom_call.1} parent=1 // loop_body
      %s25 = ssub.s32 %s20, 1
      %s26 = ssub.s32 %s20, 2
      %s27 = sadd.s32 %s20, 1
      %s28 = ssub.s32 %s20, %s27
      %p29 = scmp.eq.s32.totalorder %s28, 0
      %s31 = sadd.s32 %s30, 1
      %s32 = scalar_select %p29, %s30, %s31
      %p35 = pneg %p29
      %p36 = scmp.eq.s32.totalorder %s20, 1
      %p37 = por %p35, %p36
      %p38 = scmp.ne.s32.totalorder %s30, %s33
      %p39 = scmp.eq.s32.totalorder %s20, 0
      %p40 = por %p38, %p39
      %p41 = scmp.ne.s32.totalorder %s30, %s33
      %p42 = scmp.eq.s32.totalorder %s25, 1
      %p43 = por %p41, %p42
      %p44 = scmp.ne.s32.totalorder %s33, %s34
      %p45 = scmp.eq.s32.totalorder %s25, 0
      %p46 = por %p44, %p45
      %p47 = scmp.ne.s32.totalorder %s33, %s34
      %p48 = scmp.eq.s32.totalorder %s26, 1
      %p49 = por %p47, %p48
      %p51 = scmp.ne.s32.totalorder %s34, %s50
      %p52 = scmp.eq.s32.totalorder %s26, 0
      %p53 = por %p51, %p52
      %s55 = sadd.s32 %s54, 1
      %p58 = scmp.eq.s32.totalorder %s20, 1
      %p59 = scmp.ne.s32.totalorder %s54, %s56
      %p60 = scmp.eq.s32.totalorder %s20, 0
      %p61 = por %p59, %p60
      %p62 = scmp.ne.s32.totalorder %s54, %s56
      %p63 = scmp.eq.s32.totalorder %s25, 1
      %p64 = por %p62, %p63
      %p65 = scmp.ne.s32.totalorder %s56, %s57
      %p66 = scmp.eq.s32.totalorder %s25, 0
      %p67 = por %p65, %p66
      %p68 = scmp.ne.s32.totalorder %s56, %s57
      %p69 = scmp.eq.s32.totalorder %s26, 1
      %p70 = por %p68, %p69
      %p72 = scmp.ne.s32.totalorder %s57, %s71
      %p73 = scmp.eq.s32.totalorder %s26, 0
      %p74 = por %p72, %p73
      %s76 = sadd.s32 %s75, 1
      %p79 = scmp.eq.s32.totalorder %s20, 1
      %p80 = scmp.ne.s32.totalorder %s75, %s77
      %p81 = scmp.eq.s32.totalorder %s20, 0
      %p82 = por %p80, %p81
      %p83 = scmp.ne.s32.totalorder %s75, %s77
      %p84 = scmp.eq.s32.totalorder %s25, 1
      %p85 = por %p83, %p84
      %p86 = scmp.ne.s32.totalorder %s77, %s78
      %p87 = scmp.eq.s32.totalorder %s25, 0
      %p88 = por %p86, %p87
      %p89 = scmp.ne.s32.totalorder %s77, %s78
      %p90 = scmp.eq.s32.totalorder %s26, 1
      %p91 = por %p89, %p90
      %p93 = scmp.ne.s32.totalorder %s78, %s92
      %p94 = scmp.eq.s32.totalorder %s26, 0
      %p95 = por %p93, %p94
      %s97 = sadd.s32 %s96, 1
      %p100 = scmp.eq.s32.totalorder %s20, 1
      %p101 = scmp.ne.s32.totalorder %s96, %s98
      %p102 = scmp.eq.s32.totalorder %s20, 0
      %p103 = por %p101, %p102
      %p104 = scmp.ne.s32.totalorder %s96, %s98
      %p105 = scmp.eq.s32.totalorder %s25, 1
      %p106 = por %p104, %p105
      %p107 = scmp.ne.s32.totalorder %s98, %s99
      %p108 = scmp.eq.s32.totalorder %s25, 0
      %p109 = por %p107, %p108
      %p110 = scmp.ne.s32.totalorder %s98, %s99
      %p111 = scmp.eq.s32.totalorder %s26, 1
      %p112 = por %p110, %p111
      %p114 = scmp.ne.s32.totalorder %s99, %s113
      %p115 = scmp.eq.s32.totalorder %s26, 0
      %p116 = por %p114, %p115
      %s118 = sadd.s32 %s117, 1
      %p121 = scmp.eq.s32.totalorder %s20, 1
      %p122 = scmp.ne.s32.totalorder %s117, %s119
      %p123 = scmp.eq.s32.totalorder %s20, 0
      %p124 = por %p122, %p123
      %p125 = scmp.ne.s32.totalorder %s117, %s119
      %p126 = scmp.eq.s32.totalorder %s25, 1
      %p127 = por %p125, %p126
      %p128 = scmp.ne.s32.totalorder %s119, %s120
      %p129 = scmp.eq.s32.totalorder %s25, 0
      %p130 = por %p128, %p129
      %p131 = scmp.ne.s32.totalorder %s119, %s120
      %p132 = scmp.eq.s32.totalorder %s26, 1
      %p133 = por %p131, %p132
      %p135 = scmp.ne.s32.totalorder %s120, %s134
      %p136 = scmp.eq.s32.totalorder %s26, 0
      %p137 = por %p135, %p136
      %s139 = sadd.s32 %s138, 1
      %p142 = scmp.eq.s32.totalorder %s20, 1
      %p143 = scmp.ne.s32.totalorder %s138, %s140
      %p144 = scmp.eq.s32.totalorder %s20, 0
      %p145 = por %p143, %p144
      %p146 = scmp.ne.s32.totalorder %s138, %s140
      %p147 = scmp.eq.s32.totalorder %s25, 1
      %p148 = por %p146, %p147
      %p149 = scmp.ne.s32.totalorder %s140, %s141
      %p150 = scmp.eq.s32.totalorder %s25, 0
      %p151 = por %p149, %p150
      %p152 = scmp.ne.s32.totalorder %s140, %s141
      %p153 = scmp.eq.s32.totalorder %s26, 1
      %p154 = por %p152, %p153
      %p156 = scmp.ne.s32.totalorder %s141, %s155
      %p157 = scmp.eq.s32.totalorder %s26, 0
      %p158 = por %p156, %p157
      %s160 = sadd.s32 %s159, 1
      %p163 = scmp.eq.s32.totalorder %s20, 1
      %p164 = scmp.ne.s32.totalorder %s159, %s161
      %p165 = scmp.eq.s32.totalorder %s20, 0
      %p166 = por %p164, %p165
      %p167 = scmp.ne.s32.totalorder %s159, %s161
      %p168 = scmp.eq.s32.totalorder %s25, 1
      %p169 = por %p167, %p168
      %p170 = scmp.ne.s32.totalorder %s161, %s162
      %p171 = scmp.eq.s32.totalorder %s25, 0
      %p172 = por %p170, %p171
      %p173 = scmp.ne.s32.totalorder %s161, %s162
      %p174 = scmp.eq.s32.totalorder %s26, 1
      %p175 = por %p173, %p174
      %p177 = scmp.ne.s32.totalorder %s162, %s176
      %p178 = scmp.eq.s32.totalorder %s26, 0
      %p179 = por %p177, %p178
      %s180 = ssub.s32 %s20, %s27
      %p181 = scmp.eq.s32.totalorder %s180, 0
      %s183 = sadd.s32 %s182, 1
      %s184 = scalar_select %p181, %s182, %s183
      %p187 = pneg %p181
      %p188 = scmp.eq.s32.totalorder %s20, 1
      %p189 = por %p187, %p188
      %p190 = scmp.ne.s32.totalorder %s182, %s185
      %p191 = scmp.eq.s32.totalorder %s20, 0
      %p192 = por %p190, %p191
      %p193 = scmp.ne.s32.totalorder %s182, %s185
      %p194 = scmp.eq.s32.totalorder %s25, 1
      %p195 = por %p193, %p194
      %p196 = scmp.ne.s32.totalorder %s185, %s186
      %p197 = scmp.eq.s32.totalorder %s25, 0
      %p198 = por %p196, %p197
      %p199 = scmp.ne.s32.totalorder %s185, %s186
      %p200 = scmp.eq.s32.totalorder %s26, 1
      %p201 = por %p199, %p200
      %p203 = scmp.ne.s32.totalorder %s186, %s202
      %p204 = scmp.eq.s32.totalorder %s26, 0
      %p205 = por %p203, %p204
      %p206 = scmp.le.s32.totalorder 1, %s20
      %p207 = scmp.lt.s32.totalorder %s20, 3
      %p208 = pnand %p206, %p207
      %p209 = pneg %p208
      // Predicated region
      $region9: #{tpu_custom_call.1} parent=5 // pred_check
        _
      $region10: #{tpu_custom_call.1} parent=5 // pred_check_branch
        %211 = sbr.rel (%p208) target = $region12
      $region11: #{tpu_custom_call.1} parent=5 // pred_region
        %s212 = ssub.s32 %s20, 1
        // Predicated region
        $region13: #{tpu_custom_call.1} parent=11 // pred_check
          %p213 = pneg %p67
        $region14: #{tpu_custom_call.1} parent=11 // pred_check_branch
          %215 = sbr.rel (%p213) target = $region16
        $region15: #{tpu_custom_call.1} parent=11 // pred_region
          _
        $region16: #{tpu_custom_call.1} parent=11 // pred_fallthru
          _
        // Predicated region
        $region17: #{tpu_custom_call.1} parent=11 // pred_check
          %p216 = pneg %p88
        $region18: #{tpu_custom_call.1} parent=11 // pred_check_branch
          %218 = sbr.rel (%p216) target = $region20
        $region19: #{tpu_custom_call.1} parent=11 // pred_region
          _
        $region20: #{tpu_custom_call.1} parent=11 // pred_fallthru
          _
        // Predicated region
        $region21: #{tpu_custom_call.1} parent=11 // pred_check
          %p219 = pneg %p109
        $region22: #{tpu_custom_call.1} parent=11 // pred_check_branch
          %221 = sbr.rel (%p219) target = $region24
        $region23: #{tpu_custom_call.1} parent=11 // pred_region
          %s223 = ssub.s32 4096, 4096
          %224 = vsyncadd [#allocation6], %s223
          %s225 = sshll.u32 [#allocation5], 4
          %s226 = int_to_ptr.vmem [resolvable:$true] %s225
          %231 = dma.hbm_to_vmem [thread:$0]  %s3, 4096, %s226, [#allocation6], 256, 256, 16
        $region24: #{tpu_custom_call.1} parent=11 // pred_fallthru
          _
        // Predicated region
        $region25: #{tpu_custom_call.1} parent=11 // pred_check
          %p232 = pneg %p130
        $region26: #{tpu_custom_call.1} parent=11 // pred_check_branch
          %234 = sbr.rel (%p232) target = $region28
        $region27: #{tpu_custom_call.1} parent=11 // pred_region
          _
        $region28: #{tpu_custom_call.1} parent=11 // pred_fallthru
          _
        // Predicated region
        $region29: #{tpu_custom_call.1} parent=11 // pred_check
          %p235 = pneg %p151
        $region30: #{tpu_custom_call.1} parent=11 // pred_check_branch
          %237 = sbr.rel (%p235) target = $region32
        $region31: #{tpu_custom_call.1} parent=11 // pred_region
          %s239 = ssub.s32 4096, 4096
          %240 = vsyncadd [#allocation6], %s239
          %s241 = sshll.u32 [#allocation7], 4
          %s242 = int_to_ptr.vmem [resolvable:$true] %s241
          %247 = dma.hbm_to_vmem [thread:$0]  %s5, 4096, %s242, [#allocation6], 64, 64, 4
        $region32: #{tpu_custom_call.1} parent=11 // pred_fallthru
          _
        // Predicated region
        $region33: #{tpu_custom_call.1} parent=11 // pred_check
          %p248 = pneg %p172
        $region34: #{tpu_custom_call.1} parent=11 // pred_check_branch
          %250 = sbr.rel (%p248) target = $region36
        $region35: #{tpu_custom_call.1} parent=11 // pred_region
          _
        $region36: #{tpu_custom_call.1} parent=11 // pred_fallthru
          _
      $region12: #{tpu_custom_call.1} parent=5 // pred_fallthru
        _
      %p251 = scmp.lt.s32.totalorder %s20, 2
      // Predicated region
      $region37: #{tpu_custom_call.1} parent=5 // pred_check
        %p252 = pneg %p251
      $region38: #{tpu_custom_call.1} parent=5 // pred_check_branch
        %254 = sbr.rel (%p252) target = $region40
      $region39: #{tpu_custom_call.1} parent=5 // pred_region
        // Predicated region
        $region41: #{tpu_custom_call.1} parent=39 // pred_check
          %p255 = pneg %p40
        $region42: #{tpu_custom_call.1} parent=39 // pred_check_branch
          %257 = sbr.rel (%p255) target = $region44
        $region43: #{tpu_custom_call.1} parent=39 // pred_region
          %s258 = sand.u32 %s30, 1
          %s259 = scalar_lea.sflag [#allocation3], %s258
          %s260 = sand.u32 %s30, 1
          %s261 = smul.addr %s260, 32
          %s262 = scalar_lea.vmem [#allocation2], %s261
          %s263 = smul.u32 4, %s20
          %s265 = ssub.s32 512, 512
          %266 = vsyncadd %s259, %s265
          %s267 = smul.addr %s263, 128
          %s268 = scalar_lea.hbm %s0, %s267
          %s269 = sshll.u32 %s262, 4
          %s270 = int_to_ptr.vmem [resolvable:$true] %s269
          %275 = dma.hbm_to_vmem [thread:$0]  %s268, 512, %s270, %s259, 128, 128, 8
        $region44: #{tpu_custom_call.1} parent=39 // pred_fallthru
          _
      $region40: #{tpu_custom_call.1} parent=5 // pred_fallthru
        _
      %p276 = scmp.le.s32.totalorder 1, %s20
      %p277 = scmp.lt.s32.totalorder %s20, 3
      %p278 = pnand %p276, %p277
      %p279 = pneg %p278
      // Predicated region
      $region45: #{tpu_custom_call.1} parent=5 // pred_check
        _
      $region46: #{tpu_custom_call.1} parent=5 // pred_check_branch
        %281 = sbr.rel (%p278) target = $region48
      $region47: #{tpu_custom_call.1} parent=5 // pred_region
        %s282 = ssub.s32 %s20, 1
        %s283 = sand.u32 %s33, 1
        %s284 = scalar_lea.sflag [#allocation3], %s283
        %s285 = sand.u32 %s33, 1
        %s286 = smul.addr %s285, 32
        %s287 = scalar_lea.vmem [#allocation2], %s286
        // Predicated region
        $region49: #{tpu_custom_call.1} parent=47 // pred_check
          %p288 = pneg %p46
        $region50: #{tpu_custom_call.1} parent=47 // pred_check_branch
          %290 = sbr.rel (%p288) target = $region52
        $region51: #{tpu_custom_call.1} parent=47 // pred_region
          %291 = dma.done %s284, 512
        $region52: #{tpu_custom_call.1} parent=47 // pred_fallthru
          _
        // Predicated region
        $region53: #{tpu_custom_call.1} parent=47 // pred_check
          %p292 = pneg %p109
        $region54: #{tpu_custom_call.1} parent=47 // pred_check_branch
          %294 = sbr.rel (%p292) target = $region56
        $region55: #{tpu_custom_call.1} parent=47 // pred_region
          %295 = dma.done [#allocation6], 4096
        $region56: #{tpu_custom_call.1} parent=47 // pred_fallthru
          _
        // Predicated region
        $region57: #{tpu_custom_call.1} parent=47 // pred_check
          %p296 = pneg %p151
        $region58: #{tpu_custom_call.1} parent=47 // pred_check_branch
          %298 = sbr.rel (%p296) target = $region60
        $region59: #{tpu_custom_call.1} parent=47 // pred_region
          %299 = dma.done [#allocation6], 4096
        $region60: #{tpu_custom_call.1} parent=47 // pred_fallthru
          _
        %s300 = sand.u32 %s33, 1
        %s301 = scalar_lea.sflag [#allocation3], %s300
        %s302 = sand.u32 %s33, 1
        %s303 = smul.addr %s302, 32
        %s304 = scalar_lea.vmem [#allocation2], %s303
        %p305 = pneg %p46
        %p306 = pneg %p43
        %p307 = pneg %p67
        %p308 = pneg %p64
        %p309 = pneg %p88
        %p310 = pneg %p85
        %p311 = pneg %p109
        %p312 = pneg %p106
        %p313 = pneg %p130
        %p314 = pneg %p127
        %p315 = pneg %p151
        %p316 = pneg %p148
        %p317 = pneg %p172
        %p318 = pneg %p169
        %p319 = pneg %p198
        %p320 = pneg %p195
        %s321 = sand.u32 %s185, 1
        %s322 = scalar_lea.sflag [#allocation4], %s321
        %s323 = sand.u32 %s185, 1
        %s324 = smul.addr %s323, 32
        %s325 = scalar_lea.vmem [#allocation8], %s324
        %s326 = smul.u32 4, %s25
        %s327 = smul.u32 4, %s25
        %v329 = vld [vmem:[%s287] sm:$0xff]
        %v330 = vld [vmem:[%s287 + $0x8] sm:$0xff]
        %v331 = vld [vmem:[%s287 + $0x10] sm:$0xff]
        %v332 = vld [vmem:[%s287 + $0x18] sm:$0xff]
        %333 = vadd.xlane.f32.xlu0 %v329
        %v334 = vpop.xlane.xlu0 %333
        %335 = vadd.xlane.f32.xlu0 %v330
        %v336 = vpop.xlane.xlu0 %335
        %337 = vadd.xlane.f32.xlu0 %v331
        %v338 = vpop.xlane.xlu0 %337
        %339 = vadd.xlane.f32.xlu0 %v332
        %v340 = vpop.xlane.xlu0 %339
        %v341 = vmul.f32 %v329, %v329
        %v342 = vmul.f32 %v330, %v330
        %v343 = vmul.f32 %v331, %v331
        %v344 = vmul.f32 %v332, %v332
        %345 = vadd.xlane.f32.xlu0 %v341
        %v346 = vpop.xlane.xlu0 %345
        %347 = vadd.xlane.f32.xlu0 %v342
        %v348 = vpop.xlane.xlu0 %347
        %349 = vadd.xlane.f32.xlu0 %v343
        %v350 = vpop.xlane.xlu0 %349
        %351 = vadd.xlane.f32.xlu0 %v344
        %v352 = vpop.xlane.xlu0 %351
        %v353 = vmul.f32 %v334, 0.0078125
        %v354 = vmul.f32 %v336, 0.0078125
        %v355 = vmul.f32 %v338, 0.0078125
        %v356 = vmul.f32 %v340, 0.0078125
        %v357 = vmul.f32 %v346, 0.0078125
        %v358 = vmul.f32 %v348, 0.0078125
        %v359 = vmul.f32 %v350, 0.0078125
        %v360 = vmul.f32 %v352, 0.0078125
        %v361 = vmul.f32 %v353, %v353
        %v362 = vmul.f32 %v354, %v354
        %v363 = vmul.f32 %v355, %v355
        %v364 = vmul.f32 %v356, %v356
        %v365 = vsub.f32 %v357, %v361
        %v366 = vsub.f32 %v358, %v362
        %v367 = vsub.f32 %v359, %v363
        %v368 = vsub.f32 %v360, %v364
        %v369 = vsub.f32 %v329, %v353
        %v370 = vsub.f32 %v330, %v354
        %v371 = vsub.f32 %v331, %v355
        %v372 = vsub.f32 %v332, %v356
        %v373 = vadd.f32 %v365, 1e-05
        %v374 = vadd.f32 %v366, 1e-05
        %v375 = vadd.f32 %v367, 1e-05
        %v376 = vadd.f32 %v368, 1e-05
        %v377 = vrsqrt.pop %v373
        %v378 = vrsqrt.pop %v374
        %v379 = vrsqrt.pop %v375
        %v380 = vrsqrt.pop %v376
        %v381 = vmul.f32 %v369, %v377
        %v382 = vmul.f32 %v370, %v378
        %v383 = vmul.f32 %v371, %v379
        %v384 = vmul.f32 %v372, %v380
        %v385 = vld [vmem:[%s1] sm:$0x1]
        %v387 = vlaneseq
        %v388 = vshrl.u32 %v387, 7
        %v389 = vsub.s32 0, %v388
        %v390 = vrot.slane %v385, %v389
        %v392 = vmul.f32 %v381, %v390
        %v393 = vmul.f32 %v382, %v390
        %v394 = vmul.f32 %v383, %v390
        %v395 = vmul.f32 %v384, %v390
        %v396 = vld [vmem:[%s2] sm:$0x1]
        %v398 = vlaneseq
        %v399 = vshrl.u32 %v398, 7
        %v400 = vsub.s32 0, %v399
        %v401 = vrot.slane %v396, %v400
        %v403 = vadd.f32 %v392, %v401
        %v404 = vadd.f32 %v393, %v401
        %v405 = vadd.f32 %v394, %v401
        %v406 = vadd.f32 %v395, %v401
        %v407 = vpack.c.bf16 %v404, %v403
        %v408 = vpack.c.bf16 %v406, %v405
        %v409 = vld [vmem:[#allocation5] sm:$0xff]
        %v410 = vld [vmem:[#allocation5 + $0x8] sm:$0xff]
        %v411 = vld [vmem:[#allocation5 + $0x10] sm:$0xff]
        %v412 = vld [vmem:[#allocation5 + $0x18] sm:$0xff]
        %v413 = vld [vmem:[#allocation5 + $0x20] sm:$0xff]
        %v414 = vld [vmem:[#allocation5 + $0x28] sm:$0xff]
        %v415 = vld [vmem:[#allocation5 + $0x30] sm:$0xff]
        %v416 = vld [vmem:[#allocation5 + $0x38] sm:$0xff]
        %v417 = vld [vmem:[#allocation5 + $0x40] sm:$0xff]
        %v418 = vld [vmem:[#allocation5 + $0x48] sm:$0xff]
        %v419 = vld [vmem:[#allocation5 + $0x50] sm:$0xff]
        %v420 = vld [vmem:[#allocation5 + $0x58] sm:$0xff]
        %v421 = vld [vmem:[#allocation5 + $0x60] sm:$0xff]
        %v422 = vld [vmem:[#allocation5 + $0x68] sm:$0xff]
        %v423 = vld [vmem:[#allocation5 + $0x70] sm:$0xff]
        %v424 = vld [vmem:[#allocation5 + $0x78] sm:$0xff]
        %v425 = vld [vmem:[#allocation5 + $0x80] sm:$0xff]
        %v426 = vld [vmem:[#allocation5 + $0x88] sm:$0xff]
        %v427 = vld [vmem:[#allocation5 + $0x90] sm:$0xff]
        %v428 = vld [vmem:[#allocation5 + $0x98] sm:$0xff]
        %v429 = vld [vmem:[#allocation5 + $0xa0] sm:$0xff]
        %v430 = vld [vmem:[#allocation5 + $0xa8] sm:$0xff]
        %v431 = vld [vmem:[#allocation5 + $0xb0] sm:$0xff]
        %v432 = vld [vmem:[#allocation5 + $0xb8] sm:$0xff]
        %v433 = vld [vmem:[#allocation5 + $0xc0] sm:$0xff]
        %v434 = vld [vmem:[#allocation5 + $0xc8] sm:$0xff]
        %v435 = vld [vmem:[#allocation5 + $0xd0] sm:$0xff]
        %v436 = vld [vmem:[#allocation5 + $0xd8] sm:$0xff]
        %v437 = vld [vmem:[#allocation5 + $0xe0] sm:$0xff]
        %v438 = vld [vmem:[#allocation5 + $0xe8] sm:$0xff]
        %v439 = vld [vmem:[#allocation5 + $0xf0] sm:$0xff]
        %v440 = vld [vmem:[#allocation5 + $0xf8] sm:$0xff]
        %v441 = vld [vmem:[%s4] sm:$0xf]
        %v443 = vlaneseq
        %v444 = vshrl.u32 %v443, 7
        %v445 = vsub.s32 0, %v444
        %v446 = vrot.slane %v441, %v445
        %v447 = vlaneseq
        %v448 = vshrl.u32 %v447, 7
        %v449 = vsub.s32 1, %v448
        %v450 = vrot.slane %v441, %v449
        %v451 = vlaneseq
        %v452 = vshrl.u32 %v451, 7
        %v453 = vsub.s32 2, %v452
        %v454 = vrot.slane %v441, %v453
        %v455 = vlaneseq
        %v456 = vshrl.u32 %v455, 7
        %v457 = vsub.s32 3, %v456
        %v458 = vrot.slane %v441, %v457
        %v495 = vunpack.c.l.b16 %v409
        %v496 = vunpack.c.h.b16 %v409
        %v497 = vunpack.c.l.b16 %v410
        %v498 = vunpack.c.h.b16 %v410
        %v499 = vunpack.c.l.b16 %v411
        %v500 = vunpack.c.h.b16 %v411
        %v501 = vunpack.c.l.b16 %v412
        %v502 = vunpack.c.h.b16 %v412
        %v503 = vunpack.c.l.b16 %v413
        %v504 = vunpack.c.h.b16 %v413
        %v505 = vunpack.c.l.b16 %v414
        %v506 = vunpack.c.h.b16 %v414
        %v507 = vunpack.c.l.b16 %v415
        %v508 = vunpack.c.h.b16 %v415
        %v509 = vunpack.c.l.b16 %v416
        %v510 = vunpack.c.h.b16 %v416
        %v511 = vunpack.c.l.b16 %v417
        %v512 = vunpack.c.h.b16 %v417
        %v513 = vunpack.c.l.b16 %v418
        %v514 = vunpack.c.h.b16 %v418
        %v515 = vunpack.c.l.b16 %v419
        %v516 = vunpack.c.h.b16 %v419
        %v517 = vunpack.c.l.b16 %v420
        %v518 = vunpack.c.h.b16 %v420
        %v519 = vunpack.c.l.b16 %v421
        %v520 = vunpack.c.h.b16 %v421
        %v521 = vunpack.c.l.b16 %v422
        %v522 = vunpack.c.h.b16 %v422
        %v523 = vunpack.c.l.b16 %v423
        %v524 = vunpack.c.h.b16 %v423
        %v525 = vunpack.c.l.b16 %v424
        %v526 = vunpack.c.h.b16 %v424
        %v527 = vunpack.c.l.b16 %v425
        %v528 = vunpack.c.h.b16 %v425
        %v529 = vunpack.c.l.b16 %v426
        %v530 = vunpack.c.h.b16 %v426
        %v531 = vunpack.c.l.b16 %v427
        %v532 = vunpack.c.h.b16 %v427
        %v533 = vunpack.c.l.b16 %v428
        %v534 = vunpack.c.h.b16 %v428
        %v535 = vunpack.c.l.b16 %v429
        %v536 = vunpack.c.h.b16 %v429
        %v537 = vunpack.c.l.b16 %v430
        %v538 = vunpack.c.h.b16 %v430
        %v539 = vunpack.c.l.b16 %v431
        %v540 = vunpack.c.h.b16 %v431
        %v541 = vunpack.c.l.b16 %v432
        %v542 = vunpack.c.h.b16 %v432
        %v543 = vunpack.c.l.b16 %v433
        %v544 = vunpack.c.h.b16 %v433
        %v545 = vunpack.c.l.b16 %v434
        %v546 = vunpack.c.h.b16 %v434
        %v547 = vunpack.c.l.b16 %v435
        %v548 = vunpack.c.h.b16 %v435
        %v549 = vunpack.c.l.b16 %v436
        %v550 = vunpack.c.h.b16 %v436
        %v551 = vunpack.c.l.b16 %v437
        %v552 = vunpack.c.h.b16 %v437
        %v553 = vunpack.c.l.b16 %v438
        %v554 = vunpack.c.h.b16 %v438
        %v555 = vunpack.c.l.b16 %v439
        %v556 = vunpack.c.h.b16 %v439
        %v557 = vunpack.c.l.b16 %v440
        %v558 = vunpack.c.h.b16 %v440
        %v559 = vpack.c.b16 %v499, %v495
        %v560 = vpack.c.b16 %v500, %v496
        %v561 = vpack.c.b16 %v501, %v497
        %v562 = vpack.c.b16 %v502, %v498
        %v563 = vpack.c.b16 %v507, %v503
        %v564 = vpack.c.b16 %v508, %v504
        %v565 = vpack.c.b16 %v509, %v505
        %v566 = vpack.c.b16 %v510, %v506
        %v567 = vpack.c.b16 %v515, %v511
        %v568 = vpack.c.b16 %v516, %v512
        %v569 = vpack.c.b16 %v517, %v513
        %v570 = vpack.c.b16 %v518, %v514
        %v571 = vpack.c.b16 %v523, %v519
        %v572 = vpack.c.b16 %v524, %v520
        %v573 = vpack.c.b16 %v525, %v521
        %v574 = vpack.c.b16 %v526, %v522
        %v575 = vpack.c.b16 %v531, %v527
        %v576 = vpack.c.b16 %v532, %v528
        %v577 = vpack.c.b16 %v533, %v529
        %v578 = vpack.c.b16 %v534, %v530
        %v579 = vpack.c.b16 %v539, %v535
        %v580 = vpack.c.b16 %v540, %v536
        %v581 = vpack.c.b16 %v541, %v537
        %v582 = vpack.c.b16 %v542, %v538
        %v583 = vpack.c.b16 %v547, %v543
        %v584 = vpack.c.b16 %v548, %v544
        %v585 = vpack.c.b16 %v549, %v545
        %v586 = vpack.c.b16 %v550, %v546
        %v587 = vpack.c.b16 %v555, %v551
        %v588 = vpack.c.b16 %v556, %v552
        %v589 = vpack.c.b16 %v557, %v553
        %v590 = vpack.c.b16 %v558, %v554
        %623 = vmatprep.subr.bf16.mxu0 %v588
        %624 = vmatpush1.bf16.msra.mxu0 %v587
        %625 = vmatprep.subr.bf16.mxu0 %v584
        %626 = vmatpush1.bf16.msra.mxu0 %v583
        %627 = vmatprep.subr.bf16.mxu0 %v580
        %628 = vmatpush1.bf16.msra.mxu0 %v579
        %629 = vmatprep.subr.bf16.mxu0 %v576
        %630 = vmatpush1.bf16.msra.mxu0 %v575
        %631 = vmatprep.subr.bf16.mxu0 %v572
        %632 = vmatpush1.bf16.msra.mxu0 %v571
        %633 = vmatprep.subr.bf16.mxu0 %v568
        %634 = vmatpush1.bf16.msra.mxu0 %v567
        %635 = vmatprep.subr.bf16.mxu0 %v564
        %636 = vmatpush1.bf16.msra.mxu0 %v563
        %637 = vmatprep.subr.bf16.mxu0 %v560
        %638 = vmatpush1.bf16.msra.mxu0 %v559
        %639 = vmatprep.subr.bf16.mxu0 0
        %640 = vmatpush2.bf16.msra.mxu0 0
        %641 = vmatprep.subr.bf16.mxu0 0
        %642 = vmatpush2.bf16.msra.mxu0 0
        %643 = vmatprep.subr.bf16.mxu0 0
        %644 = vmatpush2.bf16.msra.mxu0 0
        %645 = vmatprep.subr.bf16.mxu0 0
        %646 = vmatpush2.bf16.msra.mxu0 0
        %647 = vmatprep.subr.bf16.mxu0 0
        %648 = vmatpush2.bf16.msra.mxu0 0
        %649 = vmatprep.subr.bf16.mxu0 0
        %650 = vmatpush2.bf16.msra.mxu0 0
        %651 = vmatprep.subr.bf16.mxu0 0
        %652 = vmatpush2.bf16.msra.mxu0 0
        %653 = vmatprep.subr.bf16.mxu0 0
        %654 = vmatpush2.bf16.msra.mxu0 0
        %655 = vmatprep.mubr.bf16.mxu0 0
        %656 = vmatmul.mubr.bf16.gmra.mxu0 %v407
        %v657 = vpop.f32.mrf.mxu0
        %v658 = vadd.f32 %v446, %v657
        %v659 = vpop.f32.mrf.mxu0
        %v660 = vadd.f32 %v450, %v659
        %v661 = vpop.f32.mrf.mxu0
        %v662 = vadd.f32 %v446, %v661
        %v663 = vpop.f32.mrf.mxu0
        %v664 = vadd.f32 %v450, %v663
        %665 = vmatprep.mubr.bf16.mxu0 0
        %666 = vmatmul.mubr.bf16.gmra.mxu0 %v408
        %v667 = vpop.f32.mrf.mxu0
        %v668 = vadd.f32 %v446, %v667
        %v669 = vpop.f32.mrf.mxu0
        %v670 = vadd.f32 %v450, %v669
        %v671 = vpop.f32.mrf.mxu0
        %v672 = vadd.f32 %v446, %v671
        %v673 = vpop.f32.mrf.mxu0
        %v674 = vadd.f32 %v450, %v673
        %675 = vdwg.mxu0
        %676 = vmatprep.subr.bf16.mxu0 %v590
        %677 = vmatpush1.bf16.msra.mxu0 %v589
        %678 = vmatprep.subr.bf16.mxu0 %v586
        %679 = vmatpush1.bf16.msra.mxu0 %v585
        %680 = vmatprep.subr.bf16.mxu0 %v582
        %681 = vmatpush1.bf16.msra.mxu0 %v581
        %682 = vmatprep.subr.bf16.mxu0 %v578
        %683 = vmatpush1.bf16.msra.mxu0 %v577
        %684 = vmatprep.subr.bf16.mxu0 %v574
        %685 = vmatpush1.bf16.msra.mxu0 %v573
        %686 = vmatprep.subr.bf16.mxu0 %v570
        %687 = vmatpush1.bf16.msra.mxu0 %v569
        %688 = vmatprep.subr.bf16.mxu0 %v566
        %689 = vmatpush1.bf16.msra.mxu0 %v565
        %690 = vmatprep.subr.bf16.mxu0 %v562
        %691 = vmatpush1.bf16.msra.mxu0 %v561
        %692 = vmatprep.subr.bf16.mxu0 0
        %693 = vmatpush2.bf16.msra.mxu0 0
        %694 = vmatprep.subr.bf16.mxu0 0
        %695 = vmatpush2.bf16.msra.mxu0 0
        %696 = vmatprep.subr.bf16.mxu0 0
        %697 = vmatpush2.bf16.msra.mxu0 0
        %698 = vmatprep.subr.bf16.mxu0 0
        %699 = vmatpush2.bf16.msra.mxu0 0
        %700 = vmatprep.subr.bf16.mxu0 0
        %701 = vmatpush2.bf16.msra.mxu0 0
        %702 = vmatprep.subr.bf16.mxu0 0
        %703 = vmatpush2.bf16.msra.mxu0 0
        %704 = vmatprep.subr.bf16.mxu0 0
        %705 = vmatpush2.bf16.msra.mxu0 0
        %706 = vmatprep.subr.bf16.mxu0 0
        %707 = vmatpush2.bf16.msra.mxu0 0
        %708 = vmatprep.mubr.bf16.mxu0 0
        %709 = vmatmul.mubr.bf16.gmra.mxu0 %v407
        %v710 = vpop.f32.mrf.mxu0
        %v711 = vadd.f32 %v454, %v710
        %v712 = vpop.f32.mrf.mxu0
        %v713 = vadd.f32 %v458, %v712
        %v714 = vpop.f32.mrf.mxu0
        %v715 = vadd.f32 %v454, %v714
        %v716 = vpop.f32.mrf.mxu0
        %v717 = vadd.f32 %v458, %v716
        %718 = vmatprep.mubr.bf16.mxu0 0
        %719 = vmatmul.mubr.bf16.gmra.mxu0 %v408
        %v720 = vpop.f32.mrf.mxu0
        %v721 = vadd.f32 %v454, %v720
        %v722 = vpop.f32.mrf.mxu0
        %v723 = vadd.f32 %v458, %v722
        %v724 = vpop.f32.mrf.mxu0
        %v725 = vadd.f32 %v454, %v724
        %v726 = vpop.f32.mrf.mxu0
        %v727 = vadd.f32 %v458, %v726
        %728 = vdwg.mxu0
        %v729 = vmax.f32 %v658, 0.0
        %v730 = vmax.f32 %v660, 0.0
        %v731 = vmax.f32 %v711, 0.0
        %v732 = vmax.f32 %v713, 0.0
        %v733 = vmax.f32 %v662, 0.0
        %v734 = vmax.f32 %v664, 0.0
        %v735 = vmax.f32 %v715, 0.0
        %v736 = vmax.f32 %v717, 0.0
        %v737 = vmax.f32 %v668, 0.0
        %v738 = vmax.f32 %v670, 0.0
        %v739 = vmax.f32 %v721, 0.0
        %v740 = vmax.f32 %v723, 0.0
        %v741 = vmax.f32 %v672, 0.0
        %v742 = vmax.f32 %v674, 0.0
        %v743 = vmax.f32 %v725, 0.0
        %v744 = vmax.f32 %v727, 0.0
        %v745 = vpack.c.bf16 %v733, %v729
        %v746 = vpack.c.bf16 %v734, %v730
        %v747 = vpack.c.bf16 %v735, %v731
        %v748 = vpack.c.bf16 %v736, %v732
        %v749 = vpack.c.bf16 %v741, %v737
        %v750 = vpack.c.bf16 %v742, %v738
        %v751 = vpack.c.bf16 %v743, %v739
        %v752 = vpack.c.bf16 %v744, %v740
        %v753 = vld [vmem:[#allocation7] sm:$0xf]
        %v754 = vld [vmem:[#allocation7 + $0x4] sm:$0xf]
        %v755 = vld [vmem:[#allocation7 + $0x8] sm:$0xf]
        %v756 = vld [vmem:[#allocation7 + $0xc] sm:$0xf]
        %v757 = vld [vmem:[#allocation7 + $0x10] sm:$0xf]
        %v758 = vld [vmem:[#allocation7 + $0x14] sm:$0xf]
        %v759 = vld [vmem:[#allocation7 + $0x18] sm:$0xf]
        %v760 = vld [vmem:[#allocation7 + $0x1c] sm:$0xf]
        %v761 = vld [vmem:[#allocation7 + $0x20] sm:$0xf]
        %v762 = vld [vmem:[#allocation7 + $0x24] sm:$0xf]
        %v763 = vld [vmem:[#allocation7 + $0x28] sm:$0xf]
        %v764 = vld [vmem:[#allocation7 + $0x2c] sm:$0xf]
        %v765 = vld [vmem:[#allocation7 + $0x30] sm:$0xf]
        %v766 = vld [vmem:[#allocation7 + $0x34] sm:$0xf]
        %v767 = vld [vmem:[#allocation7 + $0x38] sm:$0xf]
        %v768 = vld [vmem:[#allocation7 + $0x3c] sm:$0xf]
        %v769 = vld [vmem:[#allocation7 + $0x40] sm:$0xf]
        %v770 = vld [vmem:[#allocation7 + $0x44] sm:$0xf]
        %v771 = vld [vmem:[#allocation7 + $0x48] sm:$0xf]
        %v772 = vld [vmem:[#allocation7 + $0x4c] sm:$0xf]
        %v773 = vld [vmem:[#allocation7 + $0x50] sm:$0xf]
        %v774 = vld [vmem:[#allocation7 + $0x54] sm:$0xf]
        %v775 = vld [vmem:[#allocation7 + $0x58] sm:$0xf]
        %v776 = vld [vmem:[#allocation7 + $0x5c] sm:$0xf]
        %v777 = vld [vmem:[#allocation7 + $0x60] sm:$0xf]
        %v778 = vld [vmem:[#allocation7 + $0x64] sm:$0xf]
        %v779 = vld [vmem:[#allocation7 + $0x68] sm:$0xf]
        %v780 = vld [vmem:[#allocation7 + $0x6c] sm:$0xf]
        %v781 = vld [vmem:[#allocation7 + $0x70] sm:$0xf]
        %v782 = vld [vmem:[#allocation7 + $0x74] sm:$0xf]
        %v783 = vld [vmem:[#allocation7 + $0x78] sm:$0xf]
        %v784 = vld [vmem:[#allocation7 + $0x7c] sm:$0xf]
        %v785 = vld [vmem:[#allocation7 + $0x80] sm:$0xf]
        %v786 = vld [vmem:[#allocation7 + $0x84] sm:$0xf]
        %v787 = vld [vmem:[#allocation7 + $0x88] sm:$0xf]
        %v788 = vld [vmem:[#allocation7 + $0x8c] sm:$0xf]
        %v789 = vld [vmem:[#allocation7 + $0x90] sm:$0xf]
        %v790 = vld [vmem:[#allocation7 + $0x94] sm:$0xf]
        %v791 = vld [vmem:[#allocation7 + $0x98] sm:$0xf]
        %v792 = vld [vmem:[#allocation7 + $0x9c] sm:$0xf]
        %v793 = vld [vmem:[#allocation7 + $0xa0] sm:$0xf]
        %v794 = vld [vmem:[#allocation7 + $0xa4] sm:$0xf]
        %v795 = vld [vmem:[#allocation7 + $0xa8] sm:$0xf]
        %v796 = vld [vmem:[#allocation7 + $0xac] sm:$0xf]
        %v797 = vld [vmem:[#allocation7 + $0xb0] sm:$0xf]
        %v798 = vld [vmem:[#allocation7 + $0xb4] sm:$0xf]
        %v799 = vld [vmem:[#allocation7 + $0xb8] sm:$0xf]
        %v800 = vld [vmem:[#allocation7 + $0xbc] sm:$0xf]
        %v801 = vld [vmem:[#allocation7 + $0xc0] sm:$0xf]
        %v802 = vld [vmem:[#allocation7 + $0xc4] sm:$0xf]
        %v803 = vld [vmem:[#allocation7 + $0xc8] sm:$0xf]
        %v804 = vld [vmem:[#allocation7 + $0xcc] sm:$0xf]
        %v805 = vld [vmem:[#allocation7 + $0xd0] sm:$0xf]
        %v806 = vld [vmem:[#allocation7 + $0xd4] sm:$0xf]
        %v807 = vld [vmem:[#allocation7 + $0xd8] sm:$0xf]
        %v808 = vld [vmem:[#allocation7 + $0xdc] sm:$0xf]
        %v809 = vld [vmem:[#allocation7 + $0xe0] sm:$0xf]
        %v810 = vld [vmem:[#allocation7 + $0xe4] sm:$0xf]
        %v811 = vld [vmem:[#allocation7 + $0xe8] sm:$0xf]
        %v812 = vld [vmem:[#allocation7 + $0xec] sm:$0xf]
        %v813 = vld [vmem:[#allocation7 + $0xf0] sm:$0xf]
        %v814 = vld [vmem:[#allocation7 + $0xf4] sm:$0xf]
        %v815 = vld [vmem:[#allocation7 + $0xf8] sm:$0xf]
        %v816 = vld [vmem:[#allocation7 + $0xfc] sm:$0xf]
        %v817 = vld [vmem:[%s6] sm:$0x1]
        %v819 = vlaneseq
        %v820 = vshrl.u32 %v819, 7
        %v821 = vsub.s32 0, %v820
        %v822 = vrot.slane %v817, %v821
        %v888 = vunpack.c.l.b16 %v753
        %v889 = vunpack.c.l.b16 %v754
        %v890 = vunpack.c.l.b16 %v755
        %v891 = vunpack.c.l.b16 %v756
        %v892 = vunpack.c.l.b16 %v757
        %v893 = vunpack.c.l.b16 %v758
        %v894 = vunpack.c.l.b16 %v759
        %v895 = vunpack.c.l.b16 %v760
        %v896 = vunpack.c.l.b16 %v761
        %v897 = vunpack.c.l.b16 %v762
        %v898 = vunpack.c.l.b16 %v763
        %v899 = vunpack.c.l.b16 %v764
        %v900 = vunpack.c.l.b16 %v765
        %v901 = vunpack.c.l.b16 %v766
        %v902 = vunpack.c.l.b16 %v767
        %v903 = vunpack.c.l.b16 %v768
        %v904 = vunpack.c.l.b16 %v769
        %v905 = vunpack.c.l.b16 %v770
        %v906 = vunpack.c.l.b16 %v771
        %v907 = vunpack.c.l.b16 %v772
        %v908 = vunpack.c.l.b16 %v773
        %v909 = vunpack.c.l.b16 %v774
        %v910 = vunpack.c.l.b16 %v775
        %v911 = vunpack.c.l.b16 %v776
        %v912 = vunpack.c.l.b16 %v777
        %v913 = vunpack.c.l.b16 %v778
        %v914 = vunpack.c.l.b16 %v779
        %v915 = vunpack.c.l.b16 %v780
        %v916 = vunpack.c.l.b16 %v781
        %v917 = vunpack.c.l.b16 %v782
        %v918 = vunpack.c.l.b16 %v783
        %v919 = vunpack.c.l.b16 %v784
        %v920 = vunpack.c.l.b16 %v785
        %v921 = vunpack.c.l.b16 %v786
        %v922 = vunpack.c.l.b16 %v787
        %v923 = vunpack.c.l.b16 %v788
        %v924 = vunpack.c.l.b16 %v789
        %v925 = vunpack.c.l.b16 %v790
        %v926 = vunpack.c.l.b16 %v791
        %v927 = vunpack.c.l.b16 %v792
        %v928 = vunpack.c.l.b16 %v793
        %v929 = vunpack.c.l.b16 %v794
        %v930 = vunpack.c.l.b16 %v795
        %v931 = vunpack.c.l.b16 %v796
        %v932 = vunpack.c.l.b16 %v797
        %v933 = vunpack.c.l.b16 %v798
        %v934 = vunpack.c.l.b16 %v799
        %v935 = vunpack.c.l.b16 %v800
        %v936 = vunpack.c.l.b16 %v801
        %v937 = vunpack.c.l.b16 %v802
        %v938 = vunpack.c.l.b16 %v803
        %v939 = vunpack.c.l.b16 %v804
        %v940 = vunpack.c.l.b16 %v805
        %v941 = vunpack.c.l.b16 %v806
        %v942 = vunpack.c.l.b16 %v807
        %v943 = vunpack.c.l.b16 %v808
        %v944 = vunpack.c.l.b16 %v809
        %v945 = vunpack.c.l.b16 %v810
        %v946 = vunpack.c.l.b16 %v811
        %v947 = vunpack.c.l.b16 %v812
        %v948 = vunpack.c.l.b16 %v813
        %v949 = vunpack.c.l.b16 %v814
        %v950 = vunpack.c.l.b16 %v815
        %v951 = vunpack.c.l.b16 %v816
        %v952 = vpack.c.b16 %v889, %v888
        %v953 = vpack.c.b16 %v891, %v890
        %v954 = vpack.c.b16 %v893, %v892
        %v955 = vpack.c.b16 %v895, %v894
        %v956 = vpack.c.b16 %v897, %v896
        %v957 = vpack.c.b16 %v899, %v898
        %v958 = vpack.c.b16 %v901, %v900
        %v959 = vpack.c.b16 %v903, %v902
        %v960 = vpack.c.b16 %v905, %v904
        %v961 = vpack.c.b16 %v907, %v906
        %v962 = vpack.c.b16 %v909, %v908
        %v963 = vpack.c.b16 %v911, %v910
        %v964 = vpack.c.b16 %v913, %v912
        %v965 = vpack.c.b16 %v915, %v914
        %v966 = vpack.c.b16 %v917, %v916
        %v967 = vpack.c.b16 %v919, %v918
        %v968 = vpack.c.b16 %v921, %v920
        %v969 = vpack.c.b16 %v923, %v922
        %v970 = vpack.c.b16 %v925, %v924
        %v971 = vpack.c.b16 %v927, %v926
        %v972 = vpack.c.b16 %v929, %v928
        %v973 = vpack.c.b16 %v931, %v930
        %v974 = vpack.c.b16 %v933, %v932
        %v975 = vpack.c.b16 %v935, %v934
        %v976 = vpack.c.b16 %v937, %v936
        %v977 = vpack.c.b16 %v939, %v938
        %v978 = vpack.c.b16 %v941, %v940
        %v979 = vpack.c.b16 %v943, %v942
        %v980 = vpack.c.b16 %v945, %v944
        %v981 = vpack.c.b16 %v947, %v946
        %v982 = vpack.c.b16 %v949, %v948
        %v983 = vpack.c.b16 %v951, %v950
        %1016 = vmatprep.subr.bf16.mxu0 0
        %1017 = vmatpush1.bf16.msra.mxu0 %v959
        %1018 = vmatprep.subr.bf16.mxu0 0
        %1019 = vmatpush1.bf16.msra.mxu0 %v958
        %1020 = vmatprep.subr.bf16.mxu0 0
        %1021 = vmatpush1.bf16.msra.mxu0 %v957
        %1022 = vmatprep.subr.bf16.mxu0 0
        %1023 = vmatpush1.bf16.msra.mxu0 %v956
        %1024 = vmatprep.subr.bf16.mxu0 0
        %1025 = vmatpush1.bf16.msra.mxu0 %v955
        %1026 = vmatprep.subr.bf16.mxu0 0
        %1027 = vmatpush1.bf16.msra.mxu0 %v954
        %1028 = vmatprep.subr.bf16.mxu0 0
        %1029 = vmatpush1.bf16.msra.mxu0 %v953
        %1030 = vmatprep.subr.bf16.mxu0 0
        %1031 = vmatpush1.bf16.msra.mxu0 %v952
        %1032 = vmatprep.subr.bf16.mxu0 0
        %1033 = vmatpush2.bf16.msra.mxu0 %v967
        %1034 = vmatprep.subr.bf16.mxu0 0
        %1035 = vmatpush2.bf16.msra.mxu0 %v966
        %1036 = vmatprep.subr.bf16.mxu0 0
        %1037 = vmatpush2.bf16.msra.mxu0 %v965
        %1038 = vmatprep.subr.bf16.mxu0 0
        %1039 = vmatpush2.bf16.msra.mxu0 %v964
        %1040 = vmatprep.subr.bf16.mxu0 0
        %1041 = vmatpush2.bf16.msra.mxu0 %v963
        %1042 = vmatprep.subr.bf16.mxu0 0
        %1043 = vmatpush2.bf16.msra.mxu0 %v962
        %1044 = vmatprep.subr.bf16.mxu0 0
        %1045 = vmatpush2.bf16.msra.mxu0 %v961
        %1046 = vmatprep.subr.bf16.mxu0 0
        %1047 = vmatpush2.bf16.msra.mxu0 %v960
        %1048 = vmatprep.mubr.bf16.mxu0 %v746
        %1049 = vmatmul.mubr.bf16.gmra.mxu0 %v745
        %v1050 = vpop.f32.mrf.mxu0
        %v1051 = vadd.f32 %v822, %v1050
        %v1052 = vpop.f32.mrf.mxu0
        %v1053 = vpop.f32.mrf.mxu0
        %v1054 = vadd.f32 %v822, %v1053
        %v1055 = vpop.f32.mrf.mxu0
        %1056 = vmatprep.mubr.bf16.mxu0 %v750
        %1057 = vmatmul.mubr.bf16.gmra.mxu0 %v749
        %v1058 = vpop.f32.mrf.mxu0
        %v1059 = vadd.f32 %v822, %v1058
        %v1060 = vpop.f32.mrf.mxu0
        %v1061 = vpop.f32.mrf.mxu0
        %v1062 = vadd.f32 %v822, %v1061
        %v1063 = vpop.f32.mrf.mxu0
        %1064 = vdwg.mxu0
        %1065 = vmatprep.subr.bf16.mxu0 0
        %1066 = vmatpush1.bf16.msra.mxu0 %v975
        %1067 = vmatprep.subr.bf16.mxu0 0
        %1068 = vmatpush1.bf16.msra.mxu0 %v974
        %1069 = vmatprep.subr.bf16.mxu0 0
        %1070 = vmatpush1.bf16.msra.mxu0 %v973
        %1071 = vmatprep.subr.bf16.mxu0 0
        %1072 = vmatpush1.bf16.msra.mxu0 %v972
        %1073 = vmatprep.subr.bf16.mxu0 0
        %1074 = vmatpush1.bf16.msra.mxu0 %v971
        %1075 = vmatprep.subr.bf16.mxu0 0
        %1076 = vmatpush1.bf16.msra.mxu0 %v970
        %1077 = vmatprep.subr.bf16.mxu0 0
        %1078 = vmatpush1.bf16.msra.mxu0 %v969
        %1079 = vmatprep.subr.bf16.mxu0 0
        %1080 = vmatpush1.bf16.msra.mxu0 %v968
        %1081 = vmatprep.subr.bf16.mxu0 0
        %1082 = vmatpush2.bf16.msra.mxu0 %v983
        %1083 = vmatprep.subr.bf16.mxu0 0
        %1084 = vmatpush2.bf16.msra.mxu0 %v982
        %1085 = vmatprep.subr.bf16.mxu0 0
        %1086 = vmatpush2.bf16.msra.mxu0 %v981
        %1087 = vmatprep.subr.bf16.mxu0 0
        %1088 = vmatpush2.bf16.msra.mxu0 %v980
        %1089 = vmatprep.subr.bf16.mxu0 0
        %1090 = vmatpush2.bf16.msra.mxu0 %v979
        %1091 = vmatprep.subr.bf16.mxu0 0
        %1092 = vmatpush2.bf16.msra.mxu0 %v978
        %1093 = vmatprep.subr.bf16.mxu0 0
        %1094 = vmatpush2.bf16.msra.mxu0 %v977
        %1095 = vmatprep.subr.bf16.mxu0 0
        %1096 = vmatpush2.bf16.msra.mxu0 %v976
        %1097 = vmatprep.mubr.bf16.mxu0 %v748
        %1098 = vmatmul.mubr.bf16.gmra.mxu0 %v747
        %v1099 = vpop.f32.mrf.mxu0
        %v1100 = vadd.f32 %v1051, %v1099
        %v1101 = vpop.f32.mrf.mxu0
        %v1102 = vpop.f32.mrf.mxu0
        %v1103 = vadd.f32 %v1054, %v1102
        %v1104 = vpop.f32.mrf.mxu0
        %1105 = vmatprep.mubr.bf16.mxu0 %v752
        %1106 = vmatmul.mubr.bf16.gmra.mxu0 %v751
        %v1107 = vpop.f32.mrf.mxu0
        %v1108 = vadd.f32 %v1059, %v1107
        %v1109 = vpop.f32.mrf.mxu0
        %v1110 = vpop.f32.mrf.mxu0
        %v1111 = vadd.f32 %v1062, %v1110
        %v1112 = vpop.f32.mrf.mxu0
        %1113 = vdwg.mxu0
        %1114 = vst [vmem:[%s325] sm:$0xff] %v1100
        %1115 = vst [vmem:[%s325 + $0x8] sm:$0xff] %v1103
        %1116 = vst [vmem:[%s325 + $0x10] sm:$0xff] %v1108
        %1117 = vst [vmem:[%s325 + $0x18] sm:$0xff] %v1111
        %s1118 = sand.u32 %s185, 1
        %s1119 = scalar_lea.sflag [#allocation4], %s1118
        %s1120 = sand.u32 %s185, 1
        %s1121 = smul.addr %s1120, 32
        %s1122 = scalar_lea.vmem [#allocation8], %s1121
        // Predicated region
        $region61: #{tpu_custom_call.1} parent=47 // pred_check
          %p1123 = pneg %p195
        $region62: #{tpu_custom_call.1} parent=47 // pred_check_branch
          %1125 = sbr.rel (%p1123) target = $region64
        $region63: #{tpu_custom_call.1} parent=47 // pred_region
          %s1126 = smul.u32 4, %s25
          %s1128 = ssub.s32 512, 512
          %1129 = vsyncadd %s1119, %s1128
          %s1130 = smul.addr %s1126, 128
          %s1131 = scalar_lea.hbm %s7, %s1130
          %s1132 = sshll.u32 %s1122, 4
          %s1133 = int_to_ptr.vmem [resolvable:$true] %s1132
          %1138 = dma.vmem_to_hbm [thread:$0]  %s1133, 512, %s1131, %s1119, 128, 128, 8
        $region64: #{tpu_custom_call.1} parent=47 // pred_fallthru
          _
      $region48: #{tpu_custom_call.1} parent=5 // pred_fallthru
        _
      %p1139 = scmp.le.s32.totalorder 2, %s20
      // Predicated region
      $region65: #{tpu_custom_call.1} parent=5 // pred_check
        %p1140 = pneg %p1139
      $region66: #{tpu_custom_call.1} parent=5 // pred_check_branch
        %1142 = sbr.rel (%p1140) target = $region68
      $region67: #{tpu_custom_call.1} parent=5 // pred_region
        %s1143 = ssub.s32 %s20, 2
        // Predicated region
        $region69: #{tpu_custom_call.1} parent=67 // pred_check
          %p1144 = pneg %p201
        $region70: #{tpu_custom_call.1} parent=67 // pred_check_branch
          %1146 = sbr.rel (%p1144) target = $region72
        $region71: #{tpu_custom_call.1} parent=67 // pred_region
          %s1147 = sand.u32 %s186, 1
          %s1148 = scalar_lea.sflag [#allocation4], %s1147
          %s1149 = sand.u32 %s186, 1
          %s1150 = smul.addr %s1149, 32
          %s1151 = scalar_lea.vmem [#allocation8], %s1150
          %1152 = dma.done %s1148, 512
        $region72: #{tpu_custom_call.1} parent=67 // pred_fallthru
          _
      $region68: #{tpu_custom_call.1} parent=5 // pred_fallthru
        _
    $region6: #{tpu_custom_call.1} parent=1 // loop_footer
      %s24 = sadd.s32 1, %s20
    $region7: #{tpu_custom_call.1} parent=1 // loop_footer_branch
      %19 = sbr.rel target = $region3
    $region8: #{tpu_custom_call.1} parent=1 // loop_exit
      _
    %1153 = vsyncpa [#allocation3], 1
    %s1154 = scalar_lea.sflag [#allocation3], 1
    %1155 = vsyncpa %s1154, 1
    %1156 = vsyncpa [#allocation6], 1
    %1157 = vsyncpa [#allocation4], 1
    %s1158 = scalar_lea.sflag [#allocation4], 1
    %1159 = vsyncpa %s1158, 1

</llo_original>
